<compile_context>
chip_gen: v7x
topology: tpu7x:2x2x1
jax: 0.10.0
libtpu: 0.0.40
codegen_flags: <defaults>
</compile_context>

<pallas_src>
import jax
import jax.numpy as jnp
from jax.experimental import pallas as pl
from jax.experimental.pallas import tpu as pltpu

LANE = 128
NEG_SLOPE = 0.01  # torch.nn.LeakyReLU default negative_slope


def _round_up(n, m):
    return ((n + m - 1) // m) * m


def _pad2(a, rows, cols):
    r, c = a.shape
    return jnp.pad(a, ((0, rows - r), (0, cols - c)))


def mlp_kernel(x_ref, w1_ref, b1_ref, w2_ref, b2_ref, w3_ref, b3_ref, o_ref):
    # In-kernel cast of x (no-op in the f32 path); avoids a separate XLA cast
    # pass over x in HBM when compute_dtype=bf16.
    x = x_ref[...].astype(w1_ref.dtype)

    # fc1 + LeakyReLU (f32 accumulation on the MXU regardless of operand dtype)
    h = jnp.dot(x, w1_ref[...], preferred_element_type=jnp.float32) + b1_ref[...]
    h = jnp.maximum(h, NEG_SLOPE * h)

    # fc2 + LeakyReLU
    h = jnp.dot(h.astype(w2_ref.dtype), w2_ref[...],
                preferred_element_type=jnp.float32) + b2_ref[...]
    h = jnp.maximum(h, NEG_SLOPE * h)

    # fc3 + LeakyReLU
    h = jnp.dot(h.astype(w3_ref.dtype), w3_ref[...],
                preferred_element_type=jnp.float32) + b3_ref[...]
    h = jnp.maximum(h, NEG_SLOPE * h)

    o_ref[...] = h.astype(o_ref.dtype)


def mlperceptron_forward(x, params, *, tile_b=None, compute_dtype=None,
                         out_dtype=None, pad_out_lanes=False,
                         vmem_budget_bytes=40 * 2**20):
    """Fused MLP forward.

    x: [B, in_feats].
    params: dict with w1,b1,w2,b2,w3,b3 (weights [in, out], biases [1, out]).
    tile_b: batch tile size; None -> auto-size against vmem_budget_bytes (cap 4096).
    compute_dtype: e.g. jnp.bfloat16 to feed the MXU bf16 operands on any
                   generation (v5e/v6e/v7x); accumulation stays f32.
    out_dtype: output dtype; defaults to compute_dtype (if set) else x.dtype.
    pad_out_lanes: True -> lane-dense 128-wide padded output (unmasked stores);
                   False (default) -> narrow output (num_classes wide, ~32x less
                   writeback traffic for small num_classes).
    """
    w1, b1 = params["w1"], params["b1"]
    w2, b2 = params["w2"], params["b2"]
    w3, b3 = params["w3"], params["b3"]

    B, in_feats = x.shape
    h1 = w1.shape[1]
    h2 = w2.shape[1]
    num_classes = w3.shape[1]

    w_dtype = compute_dtype if compute_dtype is not None else w1.dtype
    if out_dtype is None:
        out_dtype = compute_dtype if compute_dtype is not None else x.dtype

    # ---- one-time lane-dense padding of the hidden widths -------------------
    h1_p = _round_up(h1, LANE)
    h2_p = _round_up(h2, LANE)
    nc_out = _round_up(num_classes, LANE) if pad_out_lanes else num_classes

    w1p = _pad2(w1, in_feats, h1_p).astype(w_dtype)
    b1p = _pad2(b1, 1, h1_p).astype(jnp.float32)
    w2p = _pad2(w2, h1_p, h2_p).astype(w_dtype)
    b2p = _pad2(b2, 1, h2_p).astype(jnp.float32)
    w3p = _pad2(w3, h2_p, nc_out).astype(w_dtype)
    b3p = _pad2(b3, 1, nc_out).astype(jnp.float32)

    # ---- dtype-aware row alignment ------------------------------------------
    x_bytes = jnp.dtype(x.dtype).itemsize
    w_bytes = jnp.dtype(w_dtype).itemsize
    o_bytes = jnp.dtype(out_dtype).itemsize
    min_bytes = min(x_bytes, w_bytes, o_bytes)
    align = 8 if min_bytes >= 4 else (16 if min_bytes == 2 else 32)

    # ---- VMEM-budgeted batch tile size ---------------------------------------
    # Per-row VMEM bytes: double-buffered x tile + double-buffered out tile +
    # f32 intermediate slabs + the in-kernel cast copy of x.
    row_bytes = (2 * in_feats * x_bytes
                 + 2 * nc_out * o_bytes
                 + 4 * (h1_p + h2_p + nc_out)
                 + in_feats * w_bytes)
    weight_bytes = 2 * sum(int(a.size) * jnp.dtype(a.dtype).itemsize
                           for a in (w1p, b1p, w2p, b2p, w3p, b3p))
    budget_rows = max(align, (vmem_budget_bytes - weight_bytes) // row_bytes)

    tile_cap = 4096 if tile_b is None else int(tile_b)
    tile_cap = max(align, min(tile_cap, budget_rows))

    if tile_cap >= B:
        tb = B                      # single full-extent block (always legal)
        grid = (1,)
    else:
        tb = max(align, (tile_cap // align) * align)
        grid = (pl.cdiv(B, tb),)    # partial last block: OOB rows dropped on write

    footprint = weight_bytes + tb * row_bytes
    vmem_limit = int(min(48 * 2**20, max(32 * 2**20, footprint + 8 * 2**20)))

    # Weights/biases: full block, constant index_map -> stay resident in VMEM
    # across all grid iterations (no re-fetch).
    def resident(arr):
        return pl.BlockSpec(arr.shape, lambda i: (0, 0))

    out = pl.pallas_call(
        mlp_kernel,
        out_shape=jax.ShapeDtypeStruct((B, nc_out), out_dtype),
        grid=grid,
        in_specs=[
            pl.BlockSpec((tb, in_feats), lambda i: (i, 0)),
            resident(w1p), resident(b1p),
            resident(w2p), resident(b2p),
            resident(w3p), resident(b3p),
        ],
        out_specs=pl.BlockSpec((tb, nc_out), lambda i: (i, 0)),
        compiler_params=pltpu.CompilerParams(
            dimension_semantics=("parallel",),
            vmem_limit_bytes=vmem_limit,
        ),
    )(x, w1p, b1p, w2p, b2p, w3p, b3p)

    if pad_out_lanes:
        out = out[:, :num_classes]
    return out


def init_params(key, in_feats, h_feats, num_classes):
    """Deterministic init mimicking nn.Linear's U(-1/sqrt(fan_in), 1/sqrt(fan_in))."""
    keys = jax.random.split(key, 6)

    def linear(kw, kb, fan_in, fan_out):
        bound = 1.0 / jnp.sqrt(jnp.float32(fan_in))
        w = jax.random.uniform(kw, (fan_in, fan_out), jnp.float32, -bound, bound)
        b = jax.random.uniform(kb, (1, fan_out), jnp.float32, -bound, bound)
        return w, b

    w1, b1 = linear(keys[0], keys[1], in_feats, h_feats)
    w2, b2 = linear(keys[2], keys[3], h_feats, 20)
    w3, b3 = linear(keys[4], keys[5], 20, num_classes)
    return {"w1": w1, "b1": b1, "w2": w2, "b2": b2, "w3": w3, "b3": b3}


def mlperceptron_ref(x, p):
    def lrelu(v):
        return jnp.where(v > 0, v, NEG_SLOPE * v)
    h = lrelu(x @ p["w1"] + p["b1"])
    h = lrelu(h @ p["w2"] + p["b2"])
    h = lrelu(h @ p["w3"] + p["b3"])
    return h


if __name__ == "__main__":
    key = jax.random.PRNGKey(0)
    k_x, k_p, k_x2 = jax.random.split(key, 3)

    batch, in_feats, h_feats, num_classes = 8, 32, 32, 4
    x = jax.random.normal(k_x, (batch, in_feats), jnp.float32)
    params = init_params(k_p, in_feats, h_feats, num_classes)
    ref = mlperceptron_ref(x, params)

    # f32 path, narrow (unpadded) output, auto tile size.
    out = jax.block_until_ready(mlperceptron_forward(x, params))
    assert out.shape == (batch, num_classes)
    assert jnp.allclose(out, ref, atol=1e-5, rtol=1e-5), "f32 mismatch vs reference"

    # f32 path, lane-dense padded output (A/B layout).
    out_pad = jax.block_until_ready(
        mlperceptron_forward(x, params, pad_out_lanes=True))
    assert jnp.allclose(out_pad, ref, atol=1e-5, rtol=1e-5), "padded-out mismatch"

    # bf16-operand / f32-accumulate path (recommended on all generations).
    out_bf16 = jax.block_until_ready(
        mlperceptron_forward(x, params, compute_dtype=jnp.bfloat16))
    assert out_bf16.dtype == jnp.bfloat16
    assert jnp.allclose(out_bf16.astype(jnp.float32), ref, atol=3e-2, rtol=3e-2), \
        "bf16 mismatch vs reference"

    # Ragged batch exercising multiple grid steps + OOB-masked partial last block.
    x2 = jax.random.normal(k_x2, (20, in_feats), jnp.float32)
    ref2 = mlperceptron_ref(x2, params)
    out2 = jax.block_until_ready(mlperceptron_forward(x2, params, tile_b=8))
    assert out2.shape == (20, num_classes)
    assert jnp.allclose(out2, ref2, atol=1e-5, rtol=1e-5), "tiled mismatch vs reference"

    # Ragged batch with the auto tile (single full-extent block, B not multiple of 8).
    out3 = jax.block_until_ready(mlperceptron_forward(x2, params))
    assert jnp.allclose(out3, ref2, atol=1e-5, rtol=1e-5), "full-extent mismatch"

    print("KERNEL_OK")
</pallas_src>

<mosaic_0001>
module attributes {stable_mosaic.version = 11 : i64} {
  func.func @mlp_kernel(%arg0: i32, %arg1: memref<8x32xf32, #tpu.memory_space<vmem>>, %arg2: memref<32x128xf32, #tpu.memory_space<vmem>>, %arg3: memref<1x128xf32, #tpu.memory_space<vmem>>, %arg4: memref<128x128xf32, #tpu.memory_space<vmem>>, %arg5: memref<1x128xf32, #tpu.memory_space<vmem>>, %arg6: memref<128x4xf32, #tpu.memory_space<vmem>>, %arg7: memref<1x4xf32, #tpu.memory_space<vmem>>, %arg8: memref<8x4xf32, #tpu.memory_space<vmem>>) attributes {dimension_semantics = [#tpu.dimension_semantics<parallel>], iteration_bounds = array<i64: 1>, scalar_prefetch = 0 : i64, scratch_operands = 0 : i64, tpu.core_type = #tpu.core_type<tc>, window_params = [{transform_indices = @transform_0, window_bounds = array<i64: 8, 32>}, {pipeline_mode = #tpu.pipeline_mode<synchronous>, transform_indices = @transform_1, window_bounds = array<i64: 32, 128>}, {pipeline_mode = #tpu.pipeline_mode<synchronous>, transform_indices = @transform_2, window_bounds = array<i64: 1, 128>}, {pipeline_mode = #tpu.pipeline_mode<synchronous>, transform_indices = @transform_3, window_bounds = array<i64: 128, 128>}, {pipeline_mode = #tpu.pipeline_mode<synchronous>, transform_indices = @transform_4, window_bounds = array<i64: 1, 128>}, {pipeline_mode = #tpu.pipeline_mode<synchronous>, transform_indices = @transform_5, window_bounds = array<i64: 128, 4>}, {pipeline_mode = #tpu.pipeline_mode<synchronous>, transform_indices = @transform_6, window_bounds = array<i64: 1, 4>}, {transform_indices = @transform_7, window_bounds = array<i64: 8, 4>}]} {
    %c0 = arith.constant 0 : index
    %c0_0 = arith.constant 0 : index
    %0 = vector.load %arg1[%c0, %c0_0] : memref<8x32xf32, #tpu.memory_space<vmem>>, vector<8x32xf32>
    %c0_1 = arith.constant 0 : index
    %c0_2 = arith.constant 0 : index
    %1 = vector.load %arg2[%c0_1, %c0_2] : memref<32x128xf32, #tpu.memory_space<vmem>>, vector<32x128xf32>
    %cst = arith.constant dense<0.000000e+00> : vector<8x128xf32>
    %2 = tpu.matmul %0, %1, %cst {dimension_numbers = #tpu.dot_dimension_numbers<[1], [0], [0], [1], [0, 0, 1, 1], [], []>} : vector<8x32xf32>, vector<32x128xf32>, vector<8x128xf32> -> vector<8x128xf32>
    %c0_3 = arith.constant 0 : index
    %c0_4 = arith.constant 0 : index
    %3 = vector.load %arg3[%c0_3, %c0_4] : memref<1x128xf32, #tpu.memory_space<vmem>>, vector<1x128xf32>
    %4 = vector.broadcast %3 : vector<1x128xf32> to vector<8x128xf32>
    %5 = arith.addf %2, %4 : vector<8x128xf32>
    %cst_5 = arith.constant 0.00999999977 : f32
    %6 = vector.broadcast %cst_5 : f32 to vector<8x128xf32>
    %7 = arith.mulf %6, %5 : vector<8x128xf32>
    %8 = arith.maximumf %5, %7 : vector<8x128xf32>
    %c0_6 = arith.constant 0 : index
    %c0_7 = arith.constant 0 : index
    %9 = vector.load %arg4[%c0_6, %c0_7] : memref<128x128xf32, #tpu.memory_space<vmem>>, vector<128x128xf32>
    %cst_8 = arith.constant dense<0.000000e+00> : vector<8x128xf32>
    %10 = tpu.matmul %8, %9, %cst_8 {dimension_numbers = #tpu.dot_dimension_numbers<[1], [0], [0], [1], [0, 0, 1, 1], [], []>} : vector<8x128xf32>, vector<128x128xf32>, vector<8x128xf32> -> vector<8x128xf32>
    %c0_9 = arith.constant 0 : index
    %c0_10 = arith.constant 0 : index
    %11 = vector.load %arg5[%c0_9, %c0_10] : memref<1x128xf32, #tpu.memory_space<vmem>>, vector<1x128xf32>
    %12 = vector.broadcast %11 : vector<1x128xf32> to vector<8x128xf32>
    %13 = arith.addf %10, %12 : vector<8x128xf32>
    %cst_11 = arith.constant 0.00999999977 : f32
    %14 = vector.broadcast %cst_11 : f32 to vector<8x128xf32>
    %15 = arith.mulf %14, %13 : vector<8x128xf32>
    %16 = arith.maximumf %13, %15 : vector<8x128xf32>
    %c0_12 = arith.constant 0 : index
    %c0_13 = arith.constant 0 : index
    %17 = vector.load %arg6[%c0_12, %c0_13] : memref<128x4xf32, #tpu.memory_space<vmem>>, vector<128x4xf32>
    %cst_14 = arith.constant dense<0.000000e+00> : vector<8x4xf32>
    %18 = tpu.matmul %16, %17, %cst_14 {dimension_numbers = #tpu.dot_dimension_numbers<[1], [0], [0], [1], [0, 0, 1, 1], [], []>} : vector<8x128xf32>, vector<128x4xf32>, vector<8x4xf32> -> vector<8x4xf32>
    %c0_15 = arith.constant 0 : index
    %c0_16 = arith.constant 0 : index
    %19 = vector.load %arg7[%c0_15, %c0_16] : memref<1x4xf32, #tpu.memory_space<vmem>>, vector<1x4xf32>
    %20 = vector.broadcast %19 : vector<1x4xf32> to vector<8x4xf32>
    %21 = arith.addf %18, %20 : vector<8x4xf32>
    %cst_17 = arith.constant 0.00999999977 : f32
    %22 = vector.broadcast %cst_17 : f32 to vector<8x4xf32>
    %23 = arith.mulf %22, %21 : vector<8x4xf32>
    %24 = arith.maximumf %21, %23 : vector<8x4xf32>
    %c0_18 = arith.constant 0 : index
    %c0_19 = arith.constant 0 : index
    %25 = vector.load %arg8[%c0_18, %c0_19] : memref<8x4xf32, #tpu.memory_space<vmem>>, vector<8x4xf32>
    tpu.vector_store %arg8[%c0_18, %c0_19], %24 {strides = array<i32>} : memref<8x4xf32, #tpu.memory_space<vmem>>, vector<8x4xf32>,
    return
  }
  func.func @transform_0(%arg0: i32) -> (i32, i32) {
    %c0_i32 = arith.constant 0 : i32
    %c0_i32_0 = arith.constant 0 : i32
    return %arg0, %c0_i32 : i32, i32
  }
  func.func @transform_1(%arg0: i32) -> (i32, i32) {
    %c0_i32 = arith.constant 0 : i32
    %c0_i32_0 = arith.constant 0 : i32
    %c0_i32_1 = arith.constant 0 : i32
    return %c0_i32, %c0_i32_0 : i32, i32
  }
  func.func @transform_2(%arg0: i32) -> (i32, i32) {
    %c0_i32 = arith.constant 0 : i32
    %c0_i32_0 = arith.constant 0 : i32
    %c0_i32_1 = arith.constant 0 : i32
    return %c0_i32, %c0_i32_0 : i32, i32
  }
  func.func @transform_3(%arg0: i32) -> (i32, i32) {
    %c0_i32 = arith.constant 0 : i32
    %c0_i32_0 = arith.constant 0 : i32
    %c0_i32_1 = arith.constant 0 : i32
    return %c0_i32, %c0_i32_0 : i32, i32
  }
  func.func @transform_4(%arg0: i32) -> (i32, i32) {
    %c0_i32 = arith.constant 0 : i32
    %c0_i32_0 = arith.constant 0 : i32
    %c0_i32_1 = arith.constant 0 : i32
    return %c0_i32, %c0_i32_0 : i32, i32
  }
  func.func @transform_5(%arg0: i32) -> (i32, i32) {
    %c0_i32 = arith.constant 0 : i32
    %c0_i32_0 = arith.constant 0 : i32
    %c0_i32_1 = arith.constant 0 : i32
    return %c0_i32, %c0_i32_0 : i32, i32
  }
  func.func @transform_6(%arg0: i32) -> (i32, i32) {
    %c0_i32 = arith.constant 0 : i32
    %c0_i32_0 = arith.constant 0 : i32
    %c0_i32_1 = arith.constant 0 : i32
    return %c0_i32, %c0_i32_0 : i32, i32
  }
  func.func @transform_7(%arg0: i32) -> (i32, i32) {
    %c0_i32 = arith.constant 0 : i32
    %c0_i32_0 = arith.constant 0 : i32
    return %arg0, %c0_i32 : i32, i32
  }
}

</mosaic_0001>

<llo_original>
// kernel: tpu_custom_call.1
$region0: #{tpu_custom_call.1}
  #allocation0 [shape = 'u32[]', space=smem, size = 0x4, offset = 0x4, fixed_abs, tag = 'smem constant byte address 0x4 - core index']
  #allocation1 [shape = 'u32[144,128]{1,0:T(1,128)}', space=vmem, size = 0x12000, scoped, tag = 'internal scratch']
  %s0 = inlined_call_operand.vmem [shape: f32[8,32], index: 0, kind: input, shape index: {}]
  %s1 = inlined_call_operand.hbm [shape: f32[32,128], index: 1, kind: input, shape index: {}]
  %s2 = inlined_call_operand.vmem [shape: f32[1,128], index: 2, kind: input, shape index: {}]
  %s3 = inlined_call_operand.vmem [shape: f32[128,128], index: 3, kind: input, shape index: {}]
  %s4 = inlined_call_operand.vmem [shape: f32[1,128], index: 4, kind: input, shape index: {}]
  %s5 = inlined_call_operand.vmem [shape: f32[128,4], index: 5, kind: input, shape index: {}]
  %s6 = inlined_call_operand.vmem [shape: f32[1,4], index: 6, kind: input, shape index: {}]
  %s7 = inlined_call_operand.vmem [shape: f32[8,4], index: 7, kind: output, shape index: {}]
  %s8 = sld [smem:[#allocation0]]
  $region42: #{tpu_custom_call.1} parent=0
    _
  %s10 = ssub.s32 1, %s8
  %s11 = scalar_select 0, %s10, %s8
  $region1: #{tpu_custom_call.1} parent=0
    #allocation2 [shape = 'u8[16384]{0}', space=vmem, size = 0x4000, scoped, tag = 'input window, operand 1, single buffered']
    #allocation3 [shape = 's32[1]{0}', space=sflag, size = 0x4, scoped, tag = 'scoped memory for tpu_custom_call.1']
    %12 = vsyncpa [#allocation3], 0
    // Predicated region
    $region2: #{tpu_custom_call.1} parent=1 // pred_check
      _
    $region3: #{tpu_custom_call.1} parent=1 // pred_check_branch
      %14 = sbr.rel (0) target = $region5
    $region4: #{tpu_custom_call.1} parent=1 // pred_region
      _
    $region5: #{tpu_custom_call.1} parent=1 // pred_fallthru
      _
    // Predicated region
    $region6: #{tpu_custom_call.1} parent=1 // pred_check
      _
    $region7: #{tpu_custom_call.1} parent=1 // pred_check_branch
      %16 = sbr.rel (0) target = $region9
    $region8: #{tpu_custom_call.1} parent=1 // pred_region
      %s18 = ssub.s32 512, 512
      %19 = vsyncadd [#allocation3], %s18
      %s20 = sshll.u32 [#allocation2], 4
      %s21 = int_to_ptr.vmem [resolvable:$true] %s20
      %26 = dma.hbm_to_vmem [thread:$0]  %s1, 512, %s21, [#allocation3], 128, 128, 8
    $region9: #{tpu_custom_call.1} parent=1 // pred_fallthru
      _
    // Predicated region
    $region10: #{tpu_custom_call.1} parent=1 // pred_check
      _
    $region11: #{tpu_custom_call.1} parent=1 // pred_check_branch
      %28 = sbr.rel (0) target = $region13
    $region12: #{tpu_custom_call.1} parent=1 // pred_region
      _
    $region13: #{tpu_custom_call.1} parent=1 // pred_fallthru
      _
    // Predicated region
    $region14: #{tpu_custom_call.1} parent=1 // pred_check
      _
    $region15: #{tpu_custom_call.1} parent=1 // pred_check_branch
      %30 = sbr.rel (0) target = $region17
    $region16: #{tpu_custom_call.1} parent=1 // pred_region
      _
    $region17: #{tpu_custom_call.1} parent=1 // pred_fallthru
      _
    // Predicated region
    $region18: #{tpu_custom_call.1} parent=1 // pred_check
      _
    $region19: #{tpu_custom_call.1} parent=1 // pred_check_branch
      %32 = sbr.rel (0) target = $region21
    $region20: #{tpu_custom_call.1} parent=1 // pred_region
      _
    $region21: #{tpu_custom_call.1} parent=1 // pred_fallthru
      _
    // Predicated region
    $region22: #{tpu_custom_call.1} parent=1 // pred_check
      _
    $region23: #{tpu_custom_call.1} parent=1 // pred_check_branch
      %34 = sbr.rel (0) target = $region25
    $region24: #{tpu_custom_call.1} parent=1 // pred_region
      _
    $region25: #{tpu_custom_call.1} parent=1 // pred_fallthru
      _
    // Predicated region
    $region26: #{tpu_custom_call.1} parent=1 // pred_check
      _
    $region27: #{tpu_custom_call.1} parent=1 // pred_check_branch
      %36 = sbr.rel (0) target = $region29
    $region28: #{tpu_custom_call.1} parent=1 // pred_region
      _
    $region29: #{tpu_custom_call.1} parent=1 // pred_fallthru
      _
    // Predicated region
    $region30: #{tpu_custom_call.1} parent=1 // pred_check
      _
    $region31: #{tpu_custom_call.1} parent=1 // pred_check_branch
      %38 = sbr.rel (0) target = $region33
    $region32: #{tpu_custom_call.1} parent=1 // pred_region
      %39 = dma.done [#allocation3], 512
    $region33: #{tpu_custom_call.1} parent=1 // pred_fallthru
      _
    %v40 = vld [vmem:[%s0] sm:$0xff]
    %v41 = vld [vmem:[#allocation2] sm:$0xff]
    %v42 = vld [vmem:[#allocation2 + $0x8] sm:$0xff]
    %v43 = vld [vmem:[#allocation2 + $0x10] sm:$0xff]
    %v44 = vld [vmem:[#allocation2 + $0x18] sm:$0xff]
    %v45 = vld [vmem:[%s2] sm:$0x1]
    %v47 = vlaneseq
    %v48 = vshrl.u32 %v47, 7
    %v49 = vsub.s32 0, %v48
    %v50 = vrot.slane %v45, %v49
    %vm52 = vcmask 261120
    %v54 = vsel %vm52, %v40, 0
    %56 = vmatprep.subr.mxu0 0.0
    %57 = vmatpush1.msra.mxu0 %v41
    %58 = vmatprep.subr.mxu0 0.0
    %59 = vmatpush1.msra.mxu0 %v42
    %60 = vmatprep.subr.mxu0 0.0
    %61 = vmatpush1.msra.mxu0 %v43
    %62 = vmatprep.subr.mxu0 0.0
    %63 = vmatpush1.msra.mxu0 %v44
    %64 = vmatprep.subr.mxu0 0.0
    %65 = vmatpush1.msra.mxu0 0.0
    %66 = vmatprep.subr.mxu0 0.0
    %67 = vmatpush1.msra.mxu0 0.0
    %68 = vmatprep.subr.mxu0 0.0
    %69 = vmatpush1.msra.mxu0 0.0
    %70 = vmatprep.subr.mxu0 0.0
    %71 = vmatpush1.msra.mxu0 0.0
    %72 = vmatprep.subr.mxu0 0.0
    %73 = vmatpush1.msra.mxu0 0.0
    %74 = vmatprep.subr.mxu0 0.0
    %75 = vmatpush1.msra.mxu0 0.0
    %76 = vmatprep.subr.mxu0 0.0
    %77 = vmatpush1.msra.mxu0 0.0
    %78 = vmatprep.subr.mxu0 0.0
    %79 = vmatpush1.msra.mxu0 0.0
    %80 = vmatprep.subr.mxu0 0.0
    %81 = vmatpush1.msra.mxu0 0.0
    %82 = vmatprep.subr.mxu0 0.0
    %83 = vmatpush1.msra.mxu0 0.0
    %84 = vmatprep.subr.mxu0 0.0
    %85 = vmatpush1.msra.mxu0 0.0
    %86 = vmatprep.subr.mxu0 0.0
    %87 = vmatpush1.msra.mxu0 0.0
    %88 = vmatprep.subr.mxu0 0.0
    %89 = vmatpush1.msra.mxu0 0.0
    %90 = vmatprep.subr.mxu0 0.0
    %91 = vmatpush1.msra.mxu0 0.0
    %92 = vmatprep.subr.mxu0 0.0
    %93 = vmatpush1.msra.mxu0 0.0
    %94 = vmatprep.subr.mxu0 0.0
    %95 = vmatpush1.msra.mxu0 0.0
    %96 = vmatprep.subr.mxu0 0.0
    %97 = vmatpush1.msra.mxu0 0.0
    %98 = vmatprep.subr.mxu0 0.0
    %99 = vmatpush1.msra.mxu0 0.0
    %100 = vmatprep.subr.mxu0 0.0
    %101 = vmatpush1.msra.mxu0 0.0
    %102 = vmatprep.subr.mxu0 0.0
    %103 = vmatpush1.msra.mxu0 0.0
    %104 = vmatprep.subr.mxu0 0.0
    %105 = vmatpush1.msra.mxu0 0.0
    %106 = vmatprep.subr.mxu0 0.0
    %107 = vmatpush1.msra.mxu0 0.0
    %108 = vmatprep.subr.mxu0 0.0
    %109 = vmatpush1.msra.mxu0 0.0
    %110 = vmatprep.subr.mxu0 0.0
    %111 = vmatpush1.msra.mxu0 0.0
    %112 = vmatprep.subr.mxu0 0.0
    %113 = vmatpush1.msra.mxu0 0.0
    %114 = vmatprep.subr.mxu0 0.0
    %115 = vmatpush1.msra.mxu0 0.0
    %116 = vmatprep.subr.mxu0 0.0
    %117 = vmatpush1.msra.mxu0 0.0
    %118 = vmatprep.subr.mxu0 0.0
    %119 = vmatpush1.msra.mxu0 0.0
    %120 = vmatprep.mubr.f32.mxu0 0.0
    %121 = vmatmul.mubr.f32.gmra.mrb[0].mxu0 %v54
    %v122 = vpop.f32.mrb[0].mxu0
    %v123 = vadd.f32 %v50, %v122
    %v124 = vpop.f32.mrb[0].mxu0
    %125 = vdwg.mxu0
    %v126 = vmul.f32 %v123, 0.01
    %v127 = vmax.f32 %v123, %v126
    %v128 = vld [vmem:[%s3] sm:$0xff]
    %v129 = vld [vmem:[%s3 + $0x8] sm:$0xff]
    %v130 = vld [vmem:[%s3 + $0x10] sm:$0xff]
    %v131 = vld [vmem:[%s3 + $0x18] sm:$0xff]
    %v132 = vld [vmem:[%s3 + $0x20] sm:$0xff]
    %v133 = vld [vmem:[%s3 + $0x28] sm:$0xff]
    %v134 = vld [vmem:[%s3 + $0x30] sm:$0xff]
    %v135 = vld [vmem:[%s3 + $0x38] sm:$0xff]
    %v136 = vld [vmem:[%s3 + $0x40] sm:$0xff]
    %v137 = vld [vmem:[%s3 + $0x48] sm:$0xff]
    %v138 = vld [vmem:[%s3 + $0x50] sm:$0xff]
    %v139 = vld [vmem:[%s3 + $0x58] sm:$0xff]
    %v140 = vld [vmem:[%s3 + $0x60] sm:$0xff]
    %v141 = vld [vmem:[%s3 + $0x68] sm:$0xff]
    %v142 = vld [vmem:[%s3 + $0x70] sm:$0xff]
    %v143 = vld [vmem:[%s3 + $0x78] sm:$0xff]
    %v144 = vld [vmem:[%s4] sm:$0x1]
    %v146 = vlaneseq
    %v147 = vshrl.u32 %v146, 7
    %v148 = vsub.s32 0, %v147
    %v149 = vrot.slane %v144, %v148
    %151 = vmatprep.subr.mxu0 0.0
    %152 = vmatpush1.msra.mxu0 %v128
    %153 = vmatprep.subr.mxu0 0.0
    %154 = vmatpush1.msra.mxu0 %v129
    %155 = vmatprep.subr.mxu0 0.0
    %156 = vmatpush1.msra.mxu0 %v130
    %157 = vmatprep.subr.mxu0 0.0
    %158 = vmatpush1.msra.mxu0 %v131
    %159 = vmatprep.subr.mxu0 0.0
    %160 = vmatpush1.msra.mxu0 %v132
    %161 = vmatprep.subr.mxu0 0.0
    %162 = vmatpush1.msra.mxu0 %v133
    %163 = vmatprep.subr.mxu0 0.0
    %164 = vmatpush1.msra.mxu0 %v134
    %165 = vmatprep.subr.mxu0 0.0
    %166 = vmatpush1.msra.mxu0 %v135
    %167 = vmatprep.subr.mxu0 0.0
    %168 = vmatpush1.msra.mxu0 %v136
    %169 = vmatprep.subr.mxu0 0.0
    %170 = vmatpush1.msra.mxu0 %v137
    %171 = vmatprep.subr.mxu0 0.0
    %172 = vmatpush1.msra.mxu0 %v138
    %173 = vmatprep.subr.mxu0 0.0
    %174 = vmatpush1.msra.mxu0 %v139
    %175 = vmatprep.subr.mxu0 0.0
    %176 = vmatpush1.msra.mxu0 %v140
    %177 = vmatprep.subr.mxu0 0.0
    %178 = vmatpush1.msra.mxu0 %v141
    %179 = vmatprep.subr.mxu0 0.0
    %180 = vmatpush1.msra.mxu0 %v142
    %181 = vmatprep.subr.mxu0 0.0
    %182 = vmatpush1.msra.mxu0 %v143
    %183 = vmatprep.subr.mxu0 0.0
    %184 = vmatpush1.msra.mxu0 0.0
    %185 = vmatprep.subr.mxu0 0.0
    %186 = vmatpush1.msra.mxu0 0.0
    %187 = vmatprep.subr.mxu0 0.0
    %188 = vmatpush1.msra.mxu0 0.0
    %189 = vmatprep.subr.mxu0 0.0
    %190 = vmatpush1.msra.mxu0 0.0
    %191 = vmatprep.subr.mxu0 0.0
    %192 = vmatpush1.msra.mxu0 0.0
    %193 = vmatprep.subr.mxu0 0.0
    %194 = vmatpush1.msra.mxu0 0.0
    %195 = vmatprep.subr.mxu0 0.0
    %196 = vmatpush1.msra.mxu0 0.0
    %197 = vmatprep.subr.mxu0 0.0
    %198 = vmatpush1.msra.mxu0 0.0
    %199 = vmatprep.subr.mxu0 0.0
    %200 = vmatpush1.msra.mxu0 0.0
    %201 = vmatprep.subr.mxu0 0.0
    %202 = vmatpush1.msra.mxu0 0.0
    %203 = vmatprep.subr.mxu0 0.0
    %204 = vmatpush1.msra.mxu0 0.0
    %205 = vmatprep.subr.mxu0 0.0
    %206 = vmatpush1.msra.mxu0 0.0
    %207 = vmatprep.subr.mxu0 0.0
    %208 = vmatpush1.msra.mxu0 0.0
    %209 = vmatprep.subr.mxu0 0.0
    %210 = vmatpush1.msra.mxu0 0.0
    %211 = vmatprep.subr.mxu0 0.0
    %212 = vmatpush1.msra.mxu0 0.0
    %213 = vmatprep.subr.mxu0 0.0
    %214 = vmatpush1.msra.mxu0 0.0
    %215 = vmatprep.mubr.f32.mxu0 0.0
    %216 = vmatmul.mubr.f32.gmra.mrb[0].mxu0 %v127
    %v217 = vpop.f32.mrb[0].mxu0
    %v218 = vadd.f32 %v149, %v217
    %v219 = vpop.f32.mrb[0].mxu0
    %220 = vdwg.mxu0
    %v221 = vmul.f32 %v218, 0.01
    %v222 = vmax.f32 %v218, %v221
    %v223 = vld [vmem:[%s5] sm:$0xff]
    %v224 = vld [vmem:[%s5 + $0x8] sm:$0xff]
    %v225 = vld [vmem:[%s5 + $0x10] sm:$0xff]
    %v226 = vld [vmem:[%s5 + $0x18] sm:$0xff]
    %v227 = vld [vmem:[%s5 + $0x20] sm:$0xff]
    %v228 = vld [vmem:[%s5 + $0x28] sm:$0xff]
    %v229 = vld [vmem:[%s5 + $0x30] sm:$0xff]
    %v230 = vld [vmem:[%s5 + $0x38] sm:$0xff]
    %v231 = vld [vmem:[%s5 + $0x40] sm:$0xff]
    %v232 = vld [vmem:[%s5 + $0x48] sm:$0xff]
    %v233 = vld [vmem:[%s5 + $0x50] sm:$0xff]
    %v234 = vld [vmem:[%s5 + $0x58] sm:$0xff]
    %v235 = vld [vmem:[%s5 + $0x60] sm:$0xff]
    %v236 = vld [vmem:[%s5 + $0x68] sm:$0xff]
    %v237 = vld [vmem:[%s5 + $0x70] sm:$0xff]
    %v238 = vld [vmem:[%s5 + $0x78] sm:$0xff]
    %v239 = vld [vmem:[%s6] sm:$0x1]
    %v241 = vlaneseq
    %v242 = vshrl.u32 %v241, 7
    %v243 = vsub.s32 0, %v242
    %v244 = vrot.slane %v239, %v243
    %246 = vmatprep.subr.mxu0 0.0
    %247 = vmatpush1.msra.mxu0 %v223
    %248 = vmatprep.subr.mxu0 0.0
    %249 = vmatpush1.msra.mxu0 %v224
    %250 = vmatprep.subr.mxu0 0.0
    %251 = vmatpush1.msra.mxu0 %v225
    %252 = vmatprep.subr.mxu0 0.0
    %253 = vmatpush1.msra.mxu0 %v226
    %254 = vmatprep.subr.mxu0 0.0
    %255 = vmatpush1.msra.mxu0 %v227
    %256 = vmatprep.subr.mxu0 0.0
    %257 = vmatpush1.msra.mxu0 %v228
    %258 = vmatprep.subr.mxu0 0.0
    %259 = vmatpush1.msra.mxu0 %v229
    %260 = vmatprep.subr.mxu0 0.0
    %261 = vmatpush1.msra.mxu0 %v230
    %262 = vmatprep.subr.mxu0 0.0
    %263 = vmatpush1.msra.mxu0 %v231
    %264 = vmatprep.subr.mxu0 0.0
    %265 = vmatpush1.msra.mxu0 %v232
    %266 = vmatprep.subr.mxu0 0.0
    %267 = vmatpush1.msra.mxu0 %v233
    %268 = vmatprep.subr.mxu0 0.0
    %269 = vmatpush1.msra.mxu0 %v234
    %270 = vmatprep.subr.mxu0 0.0
    %271 = vmatpush1.msra.mxu0 %v235
    %272 = vmatprep.subr.mxu0 0.0
    %273 = vmatpush1.msra.mxu0 %v236
    %274 = vmatprep.subr.mxu0 0.0
    %275 = vmatpush1.msra.mxu0 %v237
    %276 = vmatprep.subr.mxu0 0.0
    %277 = vmatpush1.msra.mxu0 %v238
    %278 = vmatprep.subr.mxu0 0.0
    %279 = vmatpush1.msra.mxu0 0.0
    %280 = vmatprep.subr.mxu0 0.0
    %281 = vmatpush1.msra.mxu0 0.0
    %282 = vmatprep.subr.mxu0 0.0
    %283 = vmatpush1.msra.mxu0 0.0
    %284 = vmatprep.subr.mxu0 0.0
    %285 = vmatpush1.msra.mxu0 0.0
    %286 = vmatprep.subr.mxu0 0.0
    %287 = vmatpush1.msra.mxu0 0.0
    %288 = vmatprep.subr.mxu0 0.0
    %289 = vmatpush1.msra.mxu0 0.0
    %290 = vmatprep.subr.mxu0 0.0
    %291 = vmatpush1.msra.mxu0 0.0
    %292 = vmatprep.subr.mxu0 0.0
    %293 = vmatpush1.msra.mxu0 0.0
    %294 = vmatprep.subr.mxu0 0.0
    %295 = vmatpush1.msra.mxu0 0.0
    %296 = vmatprep.subr.mxu0 0.0
    %297 = vmatpush1.msra.mxu0 0.0
    %298 = vmatprep.subr.mxu0 0.0
    %299 = vmatpush1.msra.mxu0 0.0
    %300 = vmatprep.subr.mxu0 0.0
    %301 = vmatpush1.msra.mxu0 0.0
    %302 = vmatprep.subr.mxu0 0.0
    %303 = vmatpush1.msra.mxu0 0.0
    %304 = vmatprep.subr.mxu0 0.0
    %305 = vmatpush1.msra.mxu0 0.0
    %306 = vmatprep.subr.mxu0 0.0
    %307 = vmatpush1.msra.mxu0 0.0
    %308 = vmatprep.subr.mxu0 0.0
    %309 = vmatpush1.msra.mxu0 0.0
    %310 = vmatprep.mubr.f32.mxu0 0.0
    %311 = vmatmul.mubr.f32.gmra.mrb[0].mxu0 %v222
    %v312 = vpop.f32.mrb[0].mxu0
    %v313 = vadd.f32 %v244, %v312
    %v314 = vpop.f32.mrb[0].mxu0
    %315 = vdwg.mxu0
    %v316 = vmul.f32 %v313, 0.01
    %v317 = vmax.f32 %v313, %v316
    %vm318 = vcmask 31744
    %319 = vst.msk [vmem:[%s7] sm:$0xff] %vm318, %v317
    // Predicated region
    $region34: #{tpu_custom_call.1} parent=1 // pred_check
      _
    $region35: #{tpu_custom_call.1} parent=1 // pred_check_branch
      %321 = sbr.rel (0) target = $region37
    $region36: #{tpu_custom_call.1} parent=1 // pred_region
      _
    $region37: #{tpu_custom_call.1} parent=1 // pred_fallthru
      _
    // Predicated region
    $region38: #{tpu_custom_call.1} parent=1 // pred_check
      _
    $region39: #{tpu_custom_call.1} parent=1 // pred_check_branch
      %323 = sbr.rel (0) target = $region41
    $region40: #{tpu_custom_call.1} parent=1 // pred_region
      _
    $region41: #{tpu_custom_call.1} parent=1 // pred_fallthru
      _
    %324 = vsyncpa [#allocation3], 1

</llo_original>
